<compile_context>
chip_gen: v7x
topology: tpu7x:2x2x1
jax: 0.10.0
libtpu: 0.0.40
codegen_flags: <defaults>
</compile_context>

<pallas_src>
import functools

import jax
import jax.numpy as jnp
from jax.experimental import pallas as pl
from jax.experimental.pallas import tpu as pltpu


def _glu_kernel(x_ref, wv_ref, wg_ref, b_ref, mb_ref, o_ref, *scratch,
                act, mm_dtype, value_in_out):
    # x_ref  : (tm, tk)   input row tile (K-slice)
    # wv_ref : (tk, tn)   value-half weight tile (selected via index_map)
    # wg_ref : (tk, tn)   gate-half  weight tile (selected via index_map)
    # b_ref  : (2,  tn)   row 0 = value bias, row 1 = gate bias (f32)
    # mb_ref : (1,  tn)   mult_bias (f32)
    # o_ref  : (tm, tn)   output tile (resident across the K axis)
    # scratch: f32 VMEM accumulator(s)
    if value_in_out:
        (acc_g_ref,) = scratch
        acc_v_ref = o_ref            # o_ref is f32 and K-resident -> accumulate in place
    else:
        acc_v_ref, acc_g_ref = scratch

    k = pl.program_id(2)

    @pl.when(k == 0)
    def _init():
        acc_v_ref[...] = jnp.zeros_like(acc_v_ref)
        acc_g_ref[...] = jnp.zeros_like(acc_g_ref)

    # In-kernel casts: bf16 MXU operands, f32 accumulation.  Cheap VPU ops,
    # hidden under the matmuls; avoids per-call HBM cast copies in the wrapper.
    x = x_ref[...].astype(mm_dtype)
    wv = wv_ref[...].astype(mm_dtype)
    wg = wg_ref[...].astype(mm_dtype)
    acc_v_ref[...] += jnp.dot(x, wv, preferred_element_type=jnp.float32)
    acc_g_ref[...] += jnp.dot(x, wg, preferred_element_type=jnp.float32)

    @pl.when(k == pl.num_programs(2) - 1)
    def _finalize():
        val = acc_v_ref[...].astype(jnp.float32) + b_ref[0:1, :]
        gate = acc_g_ref[...] + b_ref[1:2, :]
        o_ref[...] = (val * act(gate) * mb_ref[...]).astype(o_ref.dtype)


def _vmem_capacity_bytes():
    """Physical VMEM of the current chip generation; conservative fallback."""
    try:
        info = pltpu.get_tpu_info()
        cap = getattr(info, "vmem_capacity_bytes", None)
        if cap:
            return int(cap)
    except Exception:
        pass
    return 64 * 1024 * 1024  # v7x per-TC VMEM (smallest of v5e/v6e/v7x)


def _lane_tile_options(dim, cap):
    """Divisors of `dim` that are multiples of 128 (descending), else full dim."""
    opts = [t for t in range(128, min(dim, cap) + 1, 128) if dim % t == 0]
    if not opts:
        return [dim]  # full extent is always a legal block dim (may be <128)
    return sorted(opts, reverse=True)


def _choose_tiles(n, dim_in, dim_out, x_bytes, w_bytes, out_bytes,
                  n_acc, budget_bytes):
    """Pick (tm, tn, tk) minimizing estimated HBM traffic within the VMEM budget."""
    tm_cap = max(16, -(-n // 16) * 16)          # don't pad rows far beyond n
    tm_opts = [t for t in (1024, 512, 256, 128, 64, 32, 16) if t <= tm_cap] or [16]
    tn_opts = _lane_tile_options(dim_out, 4096)
    tk_opts = _lane_tile_options(dim_in, 2048)

    def vmem_use(tm, tn, tk):
        return (2 * tm * tk * x_bytes            # x tile (double buffered)
                + 2 * 2 * tk * tn * w_bytes      # value + gate weight tiles
                + 2 * tm * tn * out_bytes        # output tile
                + n_acc * tm * tn * 4)           # f32 accumulator(s)

    best = None
    for tn in tn_opts:
        for tm in tm_opts:
            for tk in tk_opts:
                if vmem_use(tm, tn, tk) > budget_bytes:
                    continue
                col_blocks = dim_out // tn
                row_blocks = -(-n // tm)
                k_blocks = dim_in // tk
                # HBM traffic: x streamed once per j block, w once per i block.
                traffic = (col_blocks * n * dim_in * x_bytes
                           + row_blocks * dim_in * 2 * dim_out * w_bytes
                           + n * dim_out * out_bytes)
                steps = row_blocks * col_blocks * k_blocks  # per-step + acc RMW proxy
                score = (traffic, steps)
                if best is None or score < best[0]:
                    best = (score, (tm, tn, tk))
    if best is None:  # nothing fits the budget: fall back to the smallest tiles
        return tm_opts[-1], tn_opts[-1], tk_opts[-1]
    return best[1]


def glu_forward(x, w, b, mult_bias=1.0, *, act=jax.nn.silu, use_bf16=True):
    """GLU forward.

    x:         (..., dim_in)
    w:         (dim_in, 2*dim_out)   Linear weight (value half | gate half)
    b:         (2*dim_out,)          Linear bias
    mult_bias: (dim_out,) array or python scalar (1.0 when mult_bias=False)
    """
    *lead, dim_in = x.shape
    dim_out = w.shape[1] // 2
    out_dtype = x.dtype
    value_in_out = jnp.dtype(out_dtype) == jnp.dtype(jnp.float32)

    n = 1
    for d in lead:
        n *= d
    x2 = x.reshape(n, dim_in)

    # ---- generation-aware tile selection -----------------------------------
    vmem_cap = _vmem_capacity_bytes()
    budget = int(vmem_cap * 0.70)                     # leave headroom for Mosaic
    x_bytes = jnp.dtype(x2.dtype).itemsize
    w_bytes = jnp.dtype(w.dtype).itemsize
    out_bytes = jnp.dtype(out_dtype).itemsize
    n_acc = 1 if value_in_out else 2
    tm, tn, tk = _choose_tiles(n, dim_in, dim_out, x_bytes, w_bytes, out_bytes,
                               n_acc, budget)

    # v7x has 2 TensorCores sharded over the "parallel" axes: avoid a 1x1
    # parallel grid when we can cheaply recover two row blocks.
    if (-(-n // tm)) * (dim_out // tn) == 1 and tm >= 32 and n > tm // 2:
        tm //= 2

    n_pad = -(-n // tm) * tm
    if n_pad != n:
        x2 = jnp.pad(x2, ((0, n_pad - n), (0, 0)))

    col_blocks = dim_out // tn
    row_blocks = n_pad // tm
    k_blocks = dim_in // tk
    grid = (row_blocks, col_blocks, k_blocks)

    # ---- operand dtype handling ---------------------------------------------
    mm_dtype = jnp.bfloat16 if use_bf16 else x2.dtype
    # Wrapper-side casts only pay off when the operand is re-streamed >= 3x;
    # otherwise the in-kernel cast is strictly cheaper in HBM bytes.
    x_mm = x2
    if use_bf16 and x2.dtype == jnp.float32 and col_blocks >= 3:
        x_mm = x2.astype(jnp.bfloat16)
    w_mm = w
    if use_bf16 and w.dtype == jnp.float32 and row_blocks >= 3:
        # Best practice: keep weights in bf16 persistently (cast once at init).
        w_mm = w.astype(jnp.bfloat16)

    # Small parameter tensors (cheap reshapes, no weight slicing).
    b2 = b.reshape(2, dim_out).astype(jnp.float32)        # row0=value, row1=gate
    mb = jnp.broadcast_to(jnp.asarray(mult_bias, jnp.float32),
                          (dim_out,)).reshape(1, dim_out)

    # ---- VMEM limit + cost estimate -----------------------------------------
    used = (2 * tm * tk * jnp.dtype(x_mm.dtype).itemsize
            + 4 * tk * tn * jnp.dtype(w_mm.dtype).itemsize
            + 2 * tm * tn * out_bytes
            + n_acc * tm * tn * 4)
    vmem_limit = min(int(vmem_cap * 0.9), used + (16 << 20))
    vmem_limit = max(vmem_limit, used + (4 << 20))

    cost = pl.CostEstimate(
        flops=int(4 * n_pad * dim_in * dim_out),
        transcendentals=int(n_pad * dim_out),
        bytes_accessed=int(n_pad * dim_in * jnp.dtype(x_mm.dtype).itemsize
                           + dim_in * 2 * dim_out * jnp.dtype(w_mm.dtype).itemsize
                           + 2 * dim_out * 4 + dim_out * 4
                           + n_pad * dim_out * out_bytes),
    )

    scratch = [pltpu.VMEM((tm, tn), jnp.float32)]          # gate accumulator
    if not value_in_out:
        scratch = [pltpu.VMEM((tm, tn), jnp.float32)] + scratch   # value accumulator

    out = pl.pallas_call(
        functools.partial(_glu_kernel, act=act, mm_dtype=mm_dtype,
                          value_in_out=value_in_out),
        out_shape=jax.ShapeDtypeStruct((n_pad, dim_out), out_dtype),
        grid_spec=pltpu.PrefetchScalarGridSpec(
            num_scalar_prefetch=0,
            grid=grid,
            in_specs=[
                # x rows (K-sliced)
                pl.BlockSpec((tm, tk), lambda i, j, k: (i, k)),
                # value half of w: column blocks [0, col_blocks)
                pl.BlockSpec((tk, tn), lambda i, j, k: (k, j)),
                # gate half of w: column blocks [col_blocks, 2*col_blocks)
                pl.BlockSpec((tk, tn),
                             lambda i, j, k, _nb=col_blocks: (k, j + _nb)),
                # biases (value row / gate row) and mult_bias
                pl.BlockSpec((2, tn), lambda i, j, k: (0, j)),
                pl.BlockSpec((1, tn), lambda i, j, k: (0, j)),
            ],
            out_specs=pl.BlockSpec((tm, tn), lambda i, j, k: (i, j)),
            scratch_shapes=scratch,
        ),
        compiler_params=pltpu.CompilerParams(
            dimension_semantics=("parallel", "parallel", "arbitrary"),
            vmem_limit_bytes=int(vmem_limit),
        ),
        cost_estimate=cost,
    )(x_mm, w_mm, w_mm, b2, mb)   # w passed twice: same HBM buffer, no copy

    return out[:n].reshape(*lead, dim_out)


if __name__ == "__main__":
    # Small shapes consistent with the module's forward.
    batch, seq, dim_in, dim_out = 2, 8, 256, 256
    key = jax.random.PRNGKey(0)
    kx, kw, kb = jax.random.split(key, 3)

    x = jax.random.normal(kx, (batch, seq, dim_in), dtype=jnp.float32)

    # nn.Linear(dim_in, dim_out*2)-style init.
    bound = 1.0 / (dim_in ** 0.5)
    w = jax.random.uniform(kw, (dim_in, 2 * dim_out), jnp.float32, -bound, bound)
    b = jax.random.uniform(kb, (2 * dim_out,), jnp.float32, -bound, bound)
    # mult_bias=True initializes to ones(dim_out).
    mult_bias = jnp.ones((dim_out,), jnp.float32)

    out = glu_forward(x, w, b, mult_bias, act=jax.nn.silu)
    out = jax.block_until_ready(out)
    assert out.shape == (batch, seq, dim_out)

    # Reference with the same bf16 matmul operands (kernel accumulates in f32).
    x_bf = x.astype(jnp.bfloat16).astype(jnp.float32)
    w_bf = w.astype(jnp.bfloat16).astype(jnp.float32)
    h = x_bf @ w_bf + b
    val, gate = h[..., :dim_out], h[..., dim_out:]
    ref = val * jax.nn.silu(gate) * mult_bias
    assert jnp.allclose(out, ref, atol=2e-3, rtol=2e-3), "mismatch vs bf16 reference"

    # Loose sanity check against the full-f32 reference.
    h32 = x @ w + b
    ref32 = h32[..., :dim_out] * jax.nn.silu(h32[..., dim_out:]) * mult_bias
    assert jnp.allclose(out, ref32, atol=5e-2, rtol=5e-2), "mismatch vs f32 reference"

    print("KERNEL_OK")
</pallas_src>

<mosaic_0001>
module attributes {stable_mosaic.version = 11 : i64} {
  func.func @_glu_kernel(%arg0: i32, %arg1: i32, %arg2: i32, %arg3: memref<16x256xf32, #tpu.memory_space<vmem>>, %arg4: memref<256x256xf32, #tpu.memory_space<vmem>>, %arg5: memref<256x256xf32, #tpu.memory_space<vmem>>, %arg6: memref<2x256xf32, #tpu.memory_space<vmem>>, %arg7: memref<1x256xf32, #tpu.memory_space<vmem>>, %arg8: memref<16x256xf32, #tpu.memory_space<vmem>>, %arg9: memref<16x256xf32, #tpu.memory_space<vmem>>) attributes {dimension_semantics = [#tpu.dimension_semantics<parallel>, #tpu.dimension_semantics<parallel>, #tpu.dimension_semantics<arbitrary>], iteration_bounds = array<i64: 1, 1, 1>, scalar_prefetch = 0 : i64, scratch_operands = 1 : i64, tpu.core_type = #tpu.core_type<tc>, window_params = [{transform_indices = @transform_0, window_bounds = array<i64: 16, 256>}, {transform_indices = @transform_1, window_bounds = array<i64: 256, 256>}, {transform_indices = @transform_2, window_bounds = array<i64: 256, 256>}, {transform_indices = @transform_3, window_bounds = array<i64: 2, 256>}, {transform_indices = @transform_4, window_bounds = array<i64: 1, 256>}, {transform_indices = @transform_5, window_bounds = array<i64: 16, 256>}]} {
    %c0_i32 = arith.constant 0 : i32
    %0 = arith.cmpi eq, %arg2, %c0_i32 : i32
    %1 = arith.extui %0 : i1 to i32
    %c0_i32_0 = arith.constant 0 : i32
    %2 = arith.cmpi ne, %1, %c0_i32_0 : i32
    scf.if %2 {
      %cst_17 = arith.constant 0.000000e+00 : f32
      %20 = vector.broadcast %cst_17 : f32 to vector<16x256xf32>
      %c0_18 = arith.constant 0 : index
      %c0_19 = arith.constant 0 : index
      %21 = vector.load %arg8[%c0_18, %c0_19] : memref<16x256xf32, #tpu.memory_space<vmem>>, vector<16x256xf32>
      tpu.vector_store %arg8[%c0_18, %c0_19], %20 {strides = array<i32>} : memref<16x256xf32, #tpu.memory_space<vmem>>, vector<16x256xf32>,
      %cst_20 = arith.constant 0.000000e+00 : f32
      %22 = vector.broadcast %cst_20 : f32 to vector<16x256xf32>
      %c0_21 = arith.constant 0 : index
      %c0_22 = arith.constant 0 : index
      %23 = vector.load %arg9[%c0_21, %c0_22] : memref<16x256xf32, #tpu.memory_space<vmem>>, vector<16x256xf32>
      tpu.vector_store %arg9[%c0_21, %c0_22], %22 {strides = array<i32>} : memref<16x256xf32, #tpu.memory_space<vmem>>, vector<16x256xf32>,
    } else {
    }
    %c0 = arith.constant 0 : index
    %c0_1 = arith.constant 0 : index
    %3 = vector.load %arg3[%c0, %c0_1] : memref<16x256xf32, #tpu.memory_space<vmem>>, vector<16x256xf32>
    %4 = arith.truncf %3 : vector<16x256xf32> to vector<16x256xbf16>
    %c0_2 = arith.constant 0 : index
    %c0_3 = arith.constant 0 : index
    %5 = vector.load %arg4[%c0_2, %c0_3] : memref<256x256xf32, #tpu.memory_space<vmem>>, vector<256x256xf32>
    %6 = arith.truncf %5 : vector<256x256xf32> to vector<256x256xbf16>
    %c0_4 = arith.constant 0 : index
    %c0_5 = arith.constant 0 : index
    %7 = vector.load %arg5[%c0_4, %c0_5] : memref<256x256xf32, #tpu.memory_space<vmem>>, vector<256x256xf32>
    %8 = arith.truncf %7 : vector<256x256xf32> to vector<256x256xbf16>
    %c0_6 = arith.constant 0 : index
    %c0_7 = arith.constant 0 : index
    %9 = vector.load %arg8[%c0_6, %c0_7] : memref<16x256xf32, #tpu.memory_space<vmem>>, vector<16x256xf32>
    %cst = arith.constant dense<0.000000e+00> : vector<16x256xf32>
    %10 = tpu.matmul %4, %6, %cst {dimension_numbers = #tpu.dot_dimension_numbers<[1], [0], [0], [1], [0, 0, 1, 1], [], []>} : vector<16x256xbf16>, vector<256x256xbf16>, vector<16x256xf32> -> vector<16x256xf32>
    %11 = arith.addf %9, %10 : vector<16x256xf32>
    %c0_8 = arith.constant 0 : index
    %c0_9 = arith.constant 0 : index
    %12 = vector.load %arg8[%c0_8, %c0_9] : memref<16x256xf32, #tpu.memory_space<vmem>>, vector<16x256xf32>
    tpu.vector_store %arg8[%c0_8, %c0_9], %11 {strides = array<i32>} : memref<16x256xf32, #tpu.memory_space<vmem>>, vector<16x256xf32>,
    %c0_10 = arith.constant 0 : index
    %c0_11 = arith.constant 0 : index
    %13 = vector.load %arg9[%c0_10, %c0_11] : memref<16x256xf32, #tpu.memory_space<vmem>>, vector<16x256xf32>
    %cst_12 = arith.constant dense<0.000000e+00> : vector<16x256xf32>
    %14 = tpu.matmul %4, %8, %cst_12 {dimension_numbers = #tpu.dot_dimension_numbers<[1], [0], [0], [1], [0, 0, 1, 1], [], []>} : vector<16x256xbf16>, vector<256x256xbf16>, vector<16x256xf32> -> vector<16x256xf32>
    %15 = arith.addf %13, %14 : vector<16x256xf32>
    %c0_13 = arith.constant 0 : index
    %c0_14 = arith.constant 0 : index
    %16 = vector.load %arg9[%c0_13, %c0_14] : memref<16x256xf32, #tpu.memory_space<vmem>>, vector<16x256xf32>
    tpu.vector_store %arg9[%c0_13, %c0_14], %15 {strides = array<i32>} : memref<16x256xf32, #tpu.memory_space<vmem>>, vector<16x256xf32>,
    %c0_i32_15 = arith.constant 0 : i32
    %17 = arith.cmpi eq, %arg2, %c0_i32_15 : i32
    %18 = arith.extui %17 : i1 to i32
    %c0_i32_16 = arith.constant 0 : i32
    %19 = arith.cmpi ne, %18, %c0_i32_16 : i32
    scf.if %19 {
      %c0_17 = arith.constant 0 : index
      %c0_18 = arith.constant 0 : index
      %20 = vector.load %arg8[%c0_17, %c0_18] : memref<16x256xf32, #tpu.memory_space<vmem>>, vector<16x256xf32>
      %c0_19 = arith.constant 0 : index
      %c0_20 = arith.constant 0 : index
      %21 = vector.load %arg6[%c0_19, %c0_20] : memref<2x256xf32, #tpu.memory_space<vmem>>, vector<1x256xf32>
      %22 = vector.broadcast %21 : vector<1x256xf32> to vector<16x256xf32>
      %23 = arith.addf %20, %22 : vector<16x256xf32>
      %c0_21 = arith.constant 0 : index
      %c0_22 = arith.constant 0 : index
      %24 = vector.load %arg9[%c0_21, %c0_22] : memref<16x256xf32, #tpu.memory_space<vmem>>, vector<16x256xf32>
      %c1 = arith.constant 1 : index
      %c0_23 = arith.constant 0 : index
      %25 = vector.load %arg6[%c1, %c0_23] : memref<2x256xf32, #tpu.memory_space<vmem>>, vector<1x256xf32>
      %26 = vector.broadcast %25 : vector<1x256xf32> to vector<16x256xf32>
      %27 = arith.addf %24, %26 : vector<16x256xf32>
      %28 = arith.negf %27 : vector<16x256xf32>
      %29 = math.exp %28 : vector<16x256xf32>
      %cst_24 = arith.constant 1.000000e+00 : f32
      %30 = vector.broadcast %cst_24 : f32 to vector<16x256xf32>
      %31 = arith.addf %30, %29 : vector<16x256xf32>
      %32 = arith.divf %30, %31 : vector<16x256xf32>
      %33 = arith.mulf %27, %32 : vector<16x256xf32>
      %34 = arith.mulf %23, %33 : vector<16x256xf32>
      %c0_25 = arith.constant 0 : index
      %c0_26 = arith.constant 0 : index
      %35 = vector.load %arg7[%c0_25, %c0_26] : memref<1x256xf32, #tpu.memory_space<vmem>>, vector<1x256xf32>
      %36 = vector.broadcast %35 : vector<1x256xf32> to vector<16x256xf32>
      %37 = arith.mulf %34, %36 : vector<16x256xf32>
      %c0_27 = arith.constant 0 : index
      %c0_28 = arith.constant 0 : index
      %38 = vector.load %arg8[%c0_27, %c0_28] : memref<16x256xf32, #tpu.memory_space<vmem>>, vector<16x256xf32>
      tpu.vector_store %arg8[%c0_27, %c0_28], %37 {strides = array<i32>} : memref<16x256xf32, #tpu.memory_space<vmem>>, vector<16x256xf32>,
    } else {
    }
    return
  }
  func.func @transform_0(%arg0: i32, %arg1: i32, %arg2: i32) -> (i32, i32) {
    %c0_i32 = arith.constant 0 : i32
    return %arg0, %arg2 : i32, i32
  }
  func.func @transform_1(%arg0: i32, %arg1: i32, %arg2: i32) -> (i32, i32) {
    %c0_i32 = arith.constant 0 : i32
    return %arg2, %arg1 : i32, i32
  }
  func.func @transform_2(%arg0: i32, %arg1: i32, %arg2: i32) -> (i32, i32) {
    %c1_i32 = arith.constant 1 : i32
    %0 = arith.addi %arg1, %c1_i32 : i32
    %c0_i32 = arith.constant 0 : i32
    return %arg2, %0 : i32, i32
  }
  func.func @transform_3(%arg0: i32, %arg1: i32, %arg2: i32) -> (i32, i32) {
    %c0_i32 = arith.constant 0 : i32
    %c0_i32_0 = arith.constant 0 : i32
    return %c0_i32, %arg1 : i32, i32
  }
  func.func @transform_4(%arg0: i32, %arg1: i32, %arg2: i32) -> (i32, i32) {
    %c0_i32 = arith.constant 0 : i32
    %c0_i32_0 = arith.constant 0 : i32
    return %c0_i32, %arg1 : i32, i32
  }
  func.func @transform_5(%arg0: i32, %arg1: i32, %arg2: i32) -> (i32, i32) {
    %c0_i32 = arith.constant 0 : i32
    return %arg0, %arg1 : i32, i32
  }
}

</mosaic_0001>

<llo_original>
// kernel: tpu_custom_call.1
$region0: #{tpu_custom_call.1}
  #allocation0 [shape = 'u32[]', space=smem, size = 0x4, offset = 0x4, fixed_abs, tag = 'smem constant byte address 0x4 - core index']
  #allocation1 [shape = 'u32[144,128]{1,0:T(1,128)}', space=vmem, size = 0x12000, scoped, tag = 'internal scratch']
  #allocation2 [shape = 'f32[16,256]{1,0:T(8,128)}', space=vmem, size = 0x4000, scoped, tag = 'scratch operand']
  %s0 = inlined_call_operand.hbm [shape: f32[16,256], index: 0, kind: input, shape index: {}]
  %s1 = inlined_call_operand.hbm [shape: f32[256,512], index: 1, kind: input, shape index: {}]
  %s2 = inlined_call_operand.hbm [shape: f32[256,512], index: 2, kind: input, shape index: {}]
  %s3 = inlined_call_operand.vmem [shape: f32[2,256], index: 3, kind: input, shape index: {}]
  %s4 = inlined_call_operand.vmem [shape: f32[1,256], index: 4, kind: input, shape index: {}]
  %s5 = inlined_call_operand.hbm [shape: f32[16,256], index: 5, kind: output, shape index: {}]
  %s6 = sld [smem:[#allocation0]]
  $region50: #{tpu_custom_call.1} parent=0
    _
  %s8 = ssub.s32 1, %s6
  %s9 = scalar_select 0, %s8, %s6
  $region1: #{tpu_custom_call.1} parent=0
    #allocation3 [shape = 'u8[16384]{0}', space=vmem, size = 0x4000, scoped, tag = 'input window, operand 0, single buffered']
    #allocation4 [shape = 's32[1]{0}', space=sflag, size = 0x4, scoped, tag = 'scoped memory for tpu_custom_call.1']
    #allocation5 [shape = 's32[1]{0}', space=sflag, size = 0x4, scoped, tag = 'scoped memory for tpu_custom_call.1']
    #allocation6 [shape = 'u8[262144]{0}', space=vmem, size = 0x40000, scoped, tag = 'input window, operand 1, single buffered']
    #allocation7 [shape = 's32[1]{0}', space=sflag, size = 0x4, scoped, tag = 'scoped memory for tpu_custom_call.1']
    #allocation8 [shape = 'u8[262144]{0}', space=vmem, size = 0x40000, scoped, tag = 'input window, operand 2, single buffered']
    #allocation9 [shape = 'u8[16384]{0}', space=vmem, size = 0x4000, scoped, tag = 'output window, operand 0, single buffered']
    %10 = vsyncpa [#allocation4], 0
    %11 = vsyncpa [#allocation7], 0
    %12 = vsyncpa [#allocation5], 0
    // Predicated region
    $region2: #{tpu_custom_call.1} parent=1 // pred_check
      _
    $region3: #{tpu_custom_call.1} parent=1 // pred_check_branch
      %14 = sbr.rel (0) target = $region5
    $region4: #{tpu_custom_call.1} parent=1 // pred_region
      %s16 = ssub.s32 512, 512
      %17 = vsyncadd [#allocation4], %s16
      %s18 = sshll.u32 [#allocation3], 4
      %s19 = int_to_ptr.vmem [resolvable:$true] %s18
      %24 = dma.hbm_to_vmem [thread:$0]  %s0, 512, %s19, [#allocation4], 256, 256, 16
    $region5: #{tpu_custom_call.1} parent=1 // pred_fallthru
      _
    // Predicated region
    $region6: #{tpu_custom_call.1} parent=1 // pred_check
      _
    $region7: #{tpu_custom_call.1} parent=1 // pred_check_branch
      %26 = sbr.rel (0) target = $region9
    $region8: #{tpu_custom_call.1} parent=1 // pred_region
      %s28 = ssub.s32 8192, 8192
      %29 = vsyncadd [#allocation7], %s28
      %s30 = sshll.u32 [#allocation6], 4
      %s31 = int_to_ptr.vmem [resolvable:$true] %s30
      %36 = dma.hbm_to_vmem [thread:$0]  %s1, 8192, %s31, [#allocation7], 512, 256, 16
    $region9: #{tpu_custom_call.1} parent=1 // pred_fallthru
      _
    // Predicated region
    $region10: #{tpu_custom_call.1} parent=1 // pred_check
      _
    $region11: #{tpu_custom_call.1} parent=1 // pred_check_branch
      %38 = sbr.rel (0) target = $region13
    $region12: #{tpu_custom_call.1} parent=1 // pred_region
      %s39 = sadd.s32 0, 1
      %s40 = smul.u32 2, %s39
      %s42 = ssub.s32 8192, 8192
      %43 = vsyncadd [#allocation7], %s42
      %s44 = smul.addr %s40, 128
      %s45 = scalar_lea.hbm %s2, %s44
      %s46 = sshll.u32 [#allocation8], 4
      %s47 = int_to_ptr.vmem [resolvable:$true] %s46
      %52 = dma.hbm_to_vmem [thread:$0]  %s45, 8192, %s47, [#allocation7], 512, 256, 16
    $region13: #{tpu_custom_call.1} parent=1 // pred_fallthru
      _
    // Predicated region
    $region14: #{tpu_custom_call.1} parent=1 // pred_check
      _
    $region15: #{tpu_custom_call.1} parent=1 // pred_check_branch
      %54 = sbr.rel (0) target = $region17
    $region16: #{tpu_custom_call.1} parent=1 // pred_region
      _
    $region17: #{tpu_custom_call.1} parent=1 // pred_fallthru
      _
    // Predicated region
    $region18: #{tpu_custom_call.1} parent=1 // pred_check
      _
    $region19: #{tpu_custom_call.1} parent=1 // pred_check_branch
      %56 = sbr.rel (0) target = $region21
    $region20: #{tpu_custom_call.1} parent=1 // pred_region
      _
    $region21: #{tpu_custom_call.1} parent=1 // pred_fallthru
      _
    // Predicated region
    $region22: #{tpu_custom_call.1} parent=1 // pred_check
      _
    $region23: #{tpu_custom_call.1} parent=1 // pred_check_branch
      %58 = sbr.rel (0) target = $region25
    $region24: #{tpu_custom_call.1} parent=1 // pred_region
      %59 = dma.done [#allocation4], 512
    $region25: #{tpu_custom_call.1} parent=1 // pred_fallthru
      _
    // Predicated region
    $region26: #{tpu_custom_call.1} parent=1 // pred_check
      _
    $region27: #{tpu_custom_call.1} parent=1 // pred_check_branch
      %61 = sbr.rel (0) target = $region29
    $region28: #{tpu_custom_call.1} parent=1 // pred_region
      %62 = dma.done [#allocation7], 8192
    $region29: #{tpu_custom_call.1} parent=1 // pred_fallthru
      _
    // Predicated region
    $region30: #{tpu_custom_call.1} parent=1 // pred_check
      _
    $region31: #{tpu_custom_call.1} parent=1 // pred_check_branch
      %64 = sbr.rel (0) target = $region33
    $region32: #{tpu_custom_call.1} parent=1 // pred_region
      %65 = dma.done [#allocation7], 8192
    $region33: #{tpu_custom_call.1} parent=1 // pred_fallthru
      _
    %s66 = sadd.s32 0, 1
    %s67 = smul.u32 2, %s66
    %p68 = scmp.eq.s32.totalorder 0, 0
    // Predicated region
    $region34: #{tpu_custom_call.1} parent=1 // pred_check
      %p69 = pneg %p68
    $region35: #{tpu_custom_call.1} parent=1 // pred_check_branch
      %71 = sbr.rel (%p69) target = $region37
    $region36: #{tpu_custom_call.1} parent=1 // pred_region
      %72 = vst [vmem:[#allocation9] sm:$0xff] 0.0
      %73 = vst [vmem:[#allocation9 + $0x8] sm:$0xff] 0.0
      %74 = vst [vmem:[#allocation9 + $0x10] sm:$0xff] 0.0
      %75 = vst [vmem:[#allocation9 + $0x18] sm:$0xff] 0.0
      %76 = vst [vmem:[#allocation2] sm:$0xff] 0.0
      %77 = vst [vmem:[#allocation2 + $0x8] sm:$0xff] 0.0
      %78 = vst [vmem:[#allocation2 + $0x10] sm:$0xff] 0.0
      %79 = vst [vmem:[#allocation2 + $0x18] sm:$0xff] 0.0
    $region37: #{tpu_custom_call.1} parent=1 // pred_fallthru
      _
    %v80 = vld [vmem:[#allocation3] sm:$0xff]
    %v81 = vld [vmem:[#allocation3 + $0x8] sm:$0xff]
    %v82 = vld [vmem:[#allocation3 + $0x10] sm:$0xff]
    %v83 = vld [vmem:[#allocation3 + $0x18] sm:$0xff]
    %v84 = vpack.c.bf16 %v82, %v80
    %v85 = vpack.c.bf16 %v83, %v81
    %v86 = vld [vmem:[#allocation6] sm:$0xff]
    %v87 = vld [vmem:[#allocation6 + $0x8] sm:$0xff]
    %v88 = vld [vmem:[#allocation6 + $0x10] sm:$0xff]
    %v89 = vld [vmem:[#allocation6 + $0x18] sm:$0xff]
    %v90 = vld [vmem:[#allocation6 + $0x20] sm:$0xff]
    %v91 = vld [vmem:[#allocation6 + $0x28] sm:$0xff]
    %v92 = vld [vmem:[#allocation6 + $0x30] sm:$0xff]
    %v93 = vld [vmem:[#allocation6 + $0x38] sm:$0xff]
    %v94 = vld [vmem:[#allocation6 + $0x40] sm:$0xff]
    %v95 = vld [vmem:[#allocation6 + $0x48] sm:$0xff]
    %v96 = vld [vmem:[#allocation6 + $0x50] sm:$0xff]
    %v97 = vld [vmem:[#allocation6 + $0x58] sm:$0xff]
    %v98 = vld [vmem:[#allocation6 + $0x60] sm:$0xff]
    %v99 = vld [vmem:[#allocation6 + $0x68] sm:$0xff]
    %v100 = vld [vmem:[#allocation6 + $0x70] sm:$0xff]
    %v101 = vld [vmem:[#allocation6 + $0x78] sm:$0xff]
    %v102 = vld [vmem:[#allocation6 + $0x80] sm:$0xff]
    %v103 = vld [vmem:[#allocation6 + $0x88] sm:$0xff]
    %v104 = vld [vmem:[#allocation6 + $0x90] sm:$0xff]
    %v105 = vld [vmem:[#allocation6 + $0x98] sm:$0xff]
    %v106 = vld [vmem:[#allocation6 + $0xa0] sm:$0xff]
    %v107 = vld [vmem:[#allocation6 + $0xa8] sm:$0xff]
    %v108 = vld [vmem:[#allocation6 + $0xb0] sm:$0xff]
    %v109 = vld [vmem:[#allocation6 + $0xb8] sm:$0xff]
    %v110 = vld [vmem:[#allocation6 + $0xc0] sm:$0xff]
    %v111 = vld [vmem:[#allocation6 + $0xc8] sm:$0xff]
    %v112 = vld [vmem:[#allocation6 + $0xd0] sm:$0xff]
    %v113 = vld [vmem:[#allocation6 + $0xd8] sm:$0xff]
    %v114 = vld [vmem:[#allocation6 + $0xe0] sm:$0xff]
    %v115 = vld [vmem:[#allocation6 + $0xe8] sm:$0xff]
    %v116 = vld [vmem:[#allocation6 + $0xf0] sm:$0xff]
    %v117 = vld [vmem:[#allocation6 + $0xf8] sm:$0xff]
    %v118 = vld [vmem:[#allocation6 + $0x100] sm:$0xff]
    %v119 = vld [vmem:[#allocation6 + $0x108] sm:$0xff]
    %v120 = vld [vmem:[#allocation6 + $0x110] sm:$0xff]
    %v121 = vld [vmem:[#allocation6 + $0x118] sm:$0xff]
    %v122 = vld [vmem:[#allocation6 + $0x120] sm:$0xff]
    %v123 = vld [vmem:[#allocation6 + $0x128] sm:$0xff]
    %v124 = vld [vmem:[#allocation6 + $0x130] sm:$0xff]
    %v125 = vld [vmem:[#allocation6 + $0x138] sm:$0xff]
    %v126 = vld [vmem:[#allocation6 + $0x140] sm:$0xff]
    %v127 = vld [vmem:[#allocation6 + $0x148] sm:$0xff]
    %v128 = vld [vmem:[#allocation6 + $0x150] sm:$0xff]
    %v129 = vld [vmem:[#allocation6 + $0x158] sm:$0xff]
    %v130 = vld [vmem:[#allocation6 + $0x160] sm:$0xff]
    %v131 = vld [vmem:[#allocation6 + $0x168] sm:$0xff]
    %v132 = vld [vmem:[#allocation6 + $0x170] sm:$0xff]
    %v133 = vld [vmem:[#allocation6 + $0x178] sm:$0xff]
    %v134 = vld [vmem:[#allocation6 + $0x180] sm:$0xff]
    %v135 = vld [vmem:[#allocation6 + $0x188] sm:$0xff]
    %v136 = vld [vmem:[#allocation6 + $0x190] sm:$0xff]
    %v137 = vld [vmem:[#allocation6 + $0x198] sm:$0xff]
    %v138 = vld [vmem:[#allocation6 + $0x1a0] sm:$0xff]
    %v139 = vld [vmem:[#allocation6 + $0x1a8] sm:$0xff]
    %v140 = vld [vmem:[#allocation6 + $0x1b0] sm:$0xff]
    %v141 = vld [vmem:[#allocation6 + $0x1b8] sm:$0xff]
    %v142 = vld [vmem:[#allocation6 + $0x1c0] sm:$0xff]
    %v143 = vld [vmem:[#allocation6 + $0x1c8] sm:$0xff]
    %v144 = vld [vmem:[#allocation6 + $0x1d0] sm:$0xff]
    %v145 = vld [vmem:[#allocation6 + $0x1d8] sm:$0xff]
    %v146 = vld [vmem:[#allocation6 + $0x1e0] sm:$0xff]
    %v147 = vld [vmem:[#allocation6 + $0x1e8] sm:$0xff]
    %v148 = vld [vmem:[#allocation6 + $0x1f0] sm:$0xff]
    %v149 = vld [vmem:[#allocation6 + $0x1f8] sm:$0xff]
    %v150 = vpack.c.bf16 %v88, %v86
    %v151 = vpack.c.bf16 %v89, %v87
    %v152 = vpack.c.bf16 %v92, %v90
    %v153 = vpack.c.bf16 %v93, %v91
    %v154 = vpack.c.bf16 %v96, %v94
    %v155 = vpack.c.bf16 %v97, %v95
    %v156 = vpack.c.bf16 %v100, %v98
    %v157 = vpack.c.bf16 %v101, %v99
    %v158 = vpack.c.bf16 %v104, %v102
    %v159 = vpack.c.bf16 %v105, %v103
    %v160 = vpack.c.bf16 %v108, %v106
    %v161 = vpack.c.bf16 %v109, %v107
    %v162 = vpack.c.bf16 %v112, %v110
    %v163 = vpack.c.bf16 %v113, %v111
    %v164 = vpack.c.bf16 %v116, %v114
    %v165 = vpack.c.bf16 %v117, %v115
    %v166 = vpack.c.bf16 %v120, %v118
    %v167 = vpack.c.bf16 %v121, %v119
    %v168 = vpack.c.bf16 %v124, %v122
    %v169 = vpack.c.bf16 %v125, %v123
    %v170 = vpack.c.bf16 %v128, %v126
    %v171 = vpack.c.bf16 %v129, %v127
    %v172 = vpack.c.bf16 %v132, %v130
    %v173 = vpack.c.bf16 %v133, %v131
    %v174 = vpack.c.bf16 %v136, %v134
    %v175 = vpack.c.bf16 %v137, %v135
    %v176 = vpack.c.bf16 %v140, %v138
    %v177 = vpack.c.bf16 %v141, %v139
    %v178 = vpack.c.bf16 %v144, %v142
    %v179 = vpack.c.bf16 %v145, %v143
    %v180 = vpack.c.bf16 %v148, %v146
    %v181 = vpack.c.bf16 %v149, %v147
    %v182 = vld [vmem:[#allocation8] sm:$0xff]
    %v183 = vld [vmem:[#allocation8 + $0x8] sm:$0xff]
    %v184 = vld [vmem:[#allocation8 + $0x10] sm:$0xff]
    %v185 = vld [vmem:[#allocation8 + $0x18] sm:$0xff]
    %v186 = vld [vmem:[#allocation8 + $0x20] sm:$0xff]
    %v187 = vld [vmem:[#allocation8 + $0x28] sm:$0xff]
    %v188 = vld [vmem:[#allocation8 + $0x30] sm:$0xff]
    %v189 = vld [vmem:[#allocation8 + $0x38] sm:$0xff]
    %v190 = vld [vmem:[#allocation8 + $0x40] sm:$0xff]
    %v191 = vld [vmem:[#allocation8 + $0x48] sm:$0xff]
    %v192 = vld [vmem:[#allocation8 + $0x50] sm:$0xff]
    %v193 = vld [vmem:[#allocation8 + $0x58] sm:$0xff]
    %v194 = vld [vmem:[#allocation8 + $0x60] sm:$0xff]
    %v195 = vld [vmem:[#allocation8 + $0x68] sm:$0xff]
    %v196 = vld [vmem:[#allocation8 + $0x70] sm:$0xff]
    %v197 = vld [vmem:[#allocation8 + $0x78] sm:$0xff]
    %v198 = vld [vmem:[#allocation8 + $0x80] sm:$0xff]
    %v199 = vld [vmem:[#allocation8 + $0x88] sm:$0xff]
    %v200 = vld [vmem:[#allocation8 + $0x90] sm:$0xff]
    %v201 = vld [vmem:[#allocation8 + $0x98] sm:$0xff]
    %v202 = vld [vmem:[#allocation8 + $0xa0] sm:$0xff]
    %v203 = vld [vmem:[#allocation8 + $0xa8] sm:$0xff]
    %v204 = vld [vmem:[#allocation8 + $0xb0] sm:$0xff]
    %v205 = vld [vmem:[#allocation8 + $0xb8] sm:$0xff]
    %v206 = vld [vmem:[#allocation8 + $0xc0] sm:$0xff]
    %v207 = vld [vmem:[#allocation8 + $0xc8] sm:$0xff]
    %v208 = vld [vmem:[#allocation8 + $0xd0] sm:$0xff]
    %v209 = vld [vmem:[#allocation8 + $0xd8] sm:$0xff]
    %v210 = vld [vmem:[#allocation8 + $0xe0] sm:$0xff]
    %v211 = vld [vmem:[#allocation8 + $0xe8] sm:$0xff]
    %v212 = vld [vmem:[#allocation8 + $0xf0] sm:$0xff]
    %v213 = vld [vmem:[#allocation8 + $0xf8] sm:$0xff]
    %v214 = vld [vmem:[#allocation8 + $0x100] sm:$0xff]
    %v215 = vld [vmem:[#allocation8 + $0x108] sm:$0xff]
    %v216 = vld [vmem:[#allocation8 + $0x110] sm:$0xff]
    %v217 = vld [vmem:[#allocation8 + $0x118] sm:$0xff]
    %v218 = vld [vmem:[#allocation8 + $0x120] sm:$0xff]
    %v219 = vld [vmem:[#allocation8 + $0x128] sm:$0xff]
    %v220 = vld [vmem:[#allocation8 + $0x130] sm:$0xff]
    %v221 = vld [vmem:[#allocation8 + $0x138] sm:$0xff]
    %v222 = vld [vmem:[#allocation8 + $0x140] sm:$0xff]
    %v223 = vld [vmem:[#allocation8 + $0x148] sm:$0xff]
    %v224 = vld [vmem:[#allocation8 + $0x150] sm:$0xff]
    %v225 = vld [vmem:[#allocation8 + $0x158] sm:$0xff]
    %v226 = vld [vmem:[#allocation8 + $0x160] sm:$0xff]
    %v227 = vld [vmem:[#allocation8 + $0x168] sm:$0xff]
    %v228 = vld [vmem:[#allocation8 + $0x170] sm:$0xff]
    %v229 = vld [vmem:[#allocation8 + $0x178] sm:$0xff]
    %v230 = vld [vmem:[#allocation8 + $0x180] sm:$0xff]
    %v231 = vld [vmem:[#allocation8 + $0x188] sm:$0xff]
    %v232 = vld [vmem:[#allocation8 + $0x190] sm:$0xff]
    %v233 = vld [vmem:[#allocation8 + $0x198] sm:$0xff]
    %v234 = vld [vmem:[#allocation8 + $0x1a0] sm:$0xff]
    %v235 = vld [vmem:[#allocation8 + $0x1a8] sm:$0xff]
    %v236 = vld [vmem:[#allocation8 + $0x1b0] sm:$0xff]
    %v237 = vld [vmem:[#allocation8 + $0x1b8] sm:$0xff]
    %v238 = vld [vmem:[#allocation8 + $0x1c0] sm:$0xff]
    %v239 = vld [vmem:[#allocation8 + $0x1c8] sm:$0xff]
    %v240 = vld [vmem:[#allocation8 + $0x1d0] sm:$0xff]
    %v241 = vld [vmem:[#allocation8 + $0x1d8] sm:$0xff]
    %v242 = vld [vmem:[#allocation8 + $0x1e0] sm:$0xff]
    %v243 = vld [vmem:[#allocation8 + $0x1e8] sm:$0xff]
    %v244 = vld [vmem:[#allocation8 + $0x1f0] sm:$0xff]
    %v245 = vld [vmem:[#allocation8 + $0x1f8] sm:$0xff]
    %v246 = vpack.c.bf16 %v184, %v182
    %v247 = vpack.c.bf16 %v185, %v183
    %v248 = vpack.c.bf16 %v188, %v186
    %v249 = vpack.c.bf16 %v189, %v187
    %v250 = vpack.c.bf16 %v192, %v190
    %v251 = vpack.c.bf16 %v193, %v191
    %v252 = vpack.c.bf16 %v196, %v194
    %v253 = vpack.c.bf16 %v197, %v195
    %v254 = vpack.c.bf16 %v200, %v198
    %v255 = vpack.c.bf16 %v201, %v199
    %v256 = vpack.c.bf16 %v204, %v202
    %v257 = vpack.c.bf16 %v205, %v203
    %v258 = vpack.c.bf16 %v208, %v206
    %v259 = vpack.c.bf16 %v209, %v207
    %v260 = vpack.c.bf16 %v212, %v210
    %v261 = vpack.c.bf16 %v213, %v211
    %v262 = vpack.c.bf16 %v216, %v214
    %v263 = vpack.c.bf16 %v217, %v215
    %v264 = vpack.c.bf16 %v220, %v218
    %v265 = vpack.c.bf16 %v221, %v219
    %v266 = vpack.c.bf16 %v224, %v222
    %v267 = vpack.c.bf16 %v225, %v223
    %v268 = vpack.c.bf16 %v228, %v226
    %v269 = vpack.c.bf16 %v229, %v227
    %v270 = vpack.c.bf16 %v232, %v230
    %v271 = vpack.c.bf16 %v233, %v231
    %v272 = vpack.c.bf16 %v236, %v234
    %v273 = vpack.c.bf16 %v237, %v235
    %v274 = vpack.c.bf16 %v240, %v238
    %v275 = vpack.c.bf16 %v241, %v239
    %v276 = vpack.c.bf16 %v244, %v242
    %v277 = vpack.c.bf16 %v245, %v243
    %v278 = vld [vmem:[#allocation9] sm:$0xff]
    %v279 = vld [vmem:[#allocation9 + $0x8] sm:$0xff]
    %v280 = vld [vmem:[#allocation9 + $0x10] sm:$0xff]
    %v281 = vld [vmem:[#allocation9 + $0x18] sm:$0xff]
    %282 = vmatprep.subr.bf16.mxu0 %v151
    %283 = vmatpush1.bf16.msra.mxu0 %v150
    %284 = vmatprep.subr.bf16.mxu0 %v153
    %285 = vmatpush1.bf16.msra.mxu0 %v152
    %286 = vmatprep.subr.bf16.mxu0 %v155
    %287 = vmatpush1.bf16.msra.mxu0 %v154
    %288 = vmatprep.subr.bf16.mxu0 %v157
    %289 = vmatpush1.bf16.msra.mxu0 %v156
    %290 = vmatprep.subr.bf16.mxu0 %v159
    %291 = vmatpush1.bf16.msra.mxu0 %v158
    %292 = vmatprep.subr.bf16.mxu0 %v161
    %293 = vmatpush1.bf16.msra.mxu0 %v160
    %294 = vmatprep.subr.bf16.mxu0 %v163
    %295 = vmatpush1.bf16.msra.mxu0 %v162
    %296 = vmatprep.subr.bf16.mxu0 %v165
    %297 = vmatpush1.bf16.msra.mxu0 %v164
    %298 = vmatprep.subr.bf16.mxu0 %v167
    %299 = vmatpush1.bf16.msra.mxu0 %v166
    %300 = vmatprep.subr.bf16.mxu0 %v169
    %301 = vmatpush1.bf16.msra.mxu0 %v168
    %302 = vmatprep.subr.bf16.mxu0 %v171
    %303 = vmatpush1.bf16.msra.mxu0 %v170
    %304 = vmatprep.subr.bf16.mxu0 %v173
    %305 = vmatpush1.bf16.msra.mxu0 %v172
    %306 = vmatprep.subr.bf16.mxu0 %v175
    %307 = vmatpush1.bf16.msra.mxu0 %v174
    %308 = vmatprep.subr.bf16.mxu0 %v177
    %309 = vmatpush1.bf16.msra.mxu0 %v176
    %310 = vmatprep.subr.bf16.mxu0 %v179
    %311 = vmatpush1.bf16.msra.mxu0 %v178
    %312 = vmatprep.subr.bf16.mxu0 %v181
    %313 = vmatpush1.bf16.msra.mxu0 %v180
    %314 = vmatprep.mubr.bf16.mxu0 %v85
    %315 = vmatmul.mubr.bf16.gmra.mrb[0].mxu0 %v84
    %v316 = vpop.f32.mrb[0].mxu0
    %v317 = vadd.f32 0.0, %v316
    %v318 = vpop.f32.mrb[0].mxu0
    %v319 = vadd.f32 0.0, %v318
    %v320 = vpop.f32.mrb[0].mxu0
    %v321 = vadd.f32 0.0, %v320
    %v322 = vpop.f32.mrb[0].mxu0
    %v323 = vadd.f32 0.0, %v322
    %324 = vdwg.mxu0
    %v325 = vadd.f32 %v278, %v317
    %v326 = vadd.f32 %v279, %v319
    %v327 = vadd.f32 %v280, %v321
    %v328 = vadd.f32 %v281, %v323
    %329 = vst [vmem:[#allocation9] sm:$0xff] %v325
    %330 = vst [vmem:[#allocation9 + $0x8] sm:$0xff] %v326
    %331 = vst [vmem:[#allocation9 + $0x10] sm:$0xff] %v327
    %332 = vst [vmem:[#allocation9 + $0x18] sm:$0xff] %v328
    %v333 = vld [vmem:[#allocation2] sm:$0xff]
    %v334 = vld [vmem:[#allocation2 + $0x8] sm:$0xff]
    %v335 = vld [vmem:[#allocation2 + $0x10] sm:$0xff]
    %v336 = vld [vmem:[#allocation2 + $0x18] sm:$0xff]
    %337 = vmatprep.subr.bf16.mxu0 %v247
    %338 = vmatpush1.bf16.msra.mxu0 %v246
    %339 = vmatprep.subr.bf16.mxu0 %v249
    %340 = vmatpush1.bf16.msra.mxu0 %v248
    %341 = vmatprep.subr.bf16.mxu0 %v251
    %342 = vmatpush1.bf16.msra.mxu0 %v250
    %343 = vmatprep.subr.bf16.mxu0 %v253
    %344 = vmatpush1.bf16.msra.mxu0 %v252
    %345 = vmatprep.subr.bf16.mxu0 %v255
    %346 = vmatpush1.bf16.msra.mxu0 %v254
    %347 = vmatprep.subr.bf16.mxu0 %v257
    %348 = vmatpush1.bf16.msra.mxu0 %v256
    %349 = vmatprep.subr.bf16.mxu0 %v259
    %350 = vmatpush1.bf16.msra.mxu0 %v258
    %351 = vmatprep.subr.bf16.mxu0 %v261
    %352 = vmatpush1.bf16.msra.mxu0 %v260
    %353 = vmatprep.subr.bf16.mxu0 %v263
    %354 = vmatpush1.bf16.msra.mxu0 %v262
    %355 = vmatprep.subr.bf16.mxu0 %v265
    %356 = vmatpush1.bf16.msra.mxu0 %v264
    %357 = vmatprep.subr.bf16.mxu0 %v267
    %358 = vmatpush1.bf16.msra.mxu0 %v266
    %359 = vmatprep.subr.bf16.mxu0 %v269
    %360 = vmatpush1.bf16.msra.mxu0 %v268
    %361 = vmatprep.subr.bf16.mxu0 %v271
    %362 = vmatpush1.bf16.msra.mxu0 %v270
    %363 = vmatprep.subr.bf16.mxu0 %v273
    %364 = vmatpush1.bf16.msra.mxu0 %v272
    %365 = vmatprep.subr.bf16.mxu0 %v275
    %366 = vmatpush1.bf16.msra.mxu0 %v274
    %367 = vmatprep.subr.bf16.mxu0 %v277
    %368 = vmatpush1.bf16.msra.mxu0 %v276
    %369 = vmatprep.mubr.bf16.mxu0 %v85
    %370 = vmatmul.mubr.bf16.gmra.mrb[0].mxu0 %v84
    %v371 = vpop.f32.mrb[0].mxu0
    %v372 = vadd.f32 0.0, %v371
    %v373 = vpop.f32.mrb[0].mxu0
    %v374 = vadd.f32 0.0, %v373
    %v375 = vpop.f32.mrb[0].mxu0
    %v376 = vadd.f32 0.0, %v375
    %v377 = vpop.f32.mrb[0].mxu0
    %v378 = vadd.f32 0.0, %v377
    %379 = vdwg.mxu0
    %v380 = vadd.f32 %v333, %v372
    %v381 = vadd.f32 %v334, %v374
    %v382 = vadd.f32 %v335, %v376
    %v383 = vadd.f32 %v336, %v378
    %384 = vst [vmem:[#allocation2] sm:$0xff] %v380
    %385 = vst [vmem:[#allocation2 + $0x8] sm:$0xff] %v381
    %386 = vst [vmem:[#allocation2 + $0x10] sm:$0xff] %v382
    %387 = vst [vmem:[#allocation2 + $0x18] sm:$0xff] %v383
    // Predicated region
    $region38: #{tpu_custom_call.1} parent=1 // pred_check
      %p388 = pneg %p68
    $region39: #{tpu_custom_call.1} parent=1 // pred_check_branch
      %390 = sbr.rel (%p388) target = $region41
    $region40: #{tpu_custom_call.1} parent=1 // pred_region
      %v391 = vld [vmem:[#allocation9] sm:$0xff]
      %v392 = vld [vmem:[#allocation9 + $0x8] sm:$0xff]
      %v393 = vld [vmem:[#allocation9 + $0x10] sm:$0xff]
      %v394 = vld [vmem:[#allocation9 + $0x18] sm:$0xff]
      %v395 = vld [vmem:[%s3] ss:$2 sm:$0x3]
      %v397 = vlaneseq
      %v398 = vshrl.u32 %v397, 7
      %v399 = vsub.s32 0, %v398
      %v400 = vrot.slane %v395, %v399
      %v401 = vlaneseq
      %v402 = vshrl.u32 %v401, 7
      %v403 = vsub.s32 1, %v402
      %v404 = vrot.slane %v395, %v403
      %v407 = vadd.f32 %v391, %v400
      %v408 = vadd.f32 %v392, %v404
      %v409 = vadd.f32 %v393, %v400
      %v410 = vadd.f32 %v394, %v404
      %v411 = vld [vmem:[#allocation2] sm:$0xff]
      %v412 = vld [vmem:[#allocation2 + $0x8] sm:$0xff]
      %v413 = vld [vmem:[#allocation2 + $0x10] sm:$0xff]
      %v414 = vld [vmem:[#allocation2 + $0x18] sm:$0xff]
      %s415 = scalar_lea.vmem %s3, 1
      %v416 = vld [vmem:[%s415] ss:$2 sm:$0x3]
      %v418 = vlaneseq
      %v419 = vshrl.u32 %v418, 7
      %v420 = vsub.s32 0, %v419
      %v421 = vrot.slane %v416, %v420
      %v422 = vlaneseq
      %v423 = vshrl.u32 %v422, 7
      %v424 = vsub.s32 1, %v423
      %v425 = vrot.slane %v416, %v424
      %v428 = vadd.f32 %v411, %v421
      %v429 = vadd.f32 %v412, %v425
      %v430 = vadd.f32 %v413, %v421
      %v431 = vadd.f32 %v414, %v425
      %v432 = vxor.u32 %v428, 2147483648
      %v433 = vxor.u32 %v429, 2147483648
      %v434 = vxor.u32 %v430, 2147483648
      %v435 = vxor.u32 %v431, 2147483648
      %v436 = vmul.f32 %v432, 1.442695
      %v437 = vpow.pop %v436
      %v438 = vmul.f32 %v433, 1.442695
      %v439 = vpow.pop %v438
      %v440 = vmul.f32 %v434, 1.442695
      %v441 = vpow.pop %v440
      %v442 = vmul.f32 %v435, 1.442695
      %v443 = vpow.pop %v442
      %v444 = vadd.f32 %v437, 1.0
      %v445 = vadd.f32 %v439, 1.0
      %v446 = vadd.f32 %v441, 1.0
      %v447 = vadd.f32 %v443, 1.0
      %v448 = vrcp.pop %v444
      %v449 = vmul.f32 1.0, %v448
      %v450 = vrcp.pop %v445
      %v451 = vmul.f32 1.0, %v450
      %v452 = vrcp.pop %v446
      %v453 = vmul.f32 1.0, %v452
      %v454 = vrcp.pop %v447
      %v455 = vmul.f32 1.0, %v454
      %v456 = vmul.f32 %v428, %v449
      %v457 = vmul.f32 %v429, %v451
      %v458 = vmul.f32 %v430, %v453
      %v459 = vmul.f32 %v431, %v455
      %v460 = vmul.f32 %v407, %v456
      %v461 = vmul.f32 %v408, %v457
      %v462 = vmul.f32 %v409, %v458
      %v463 = vmul.f32 %v410, %v459
      %v464 = vld [vmem:[%s4] sm:$0x3]
      %v466 = vlaneseq
      %v467 = vshrl.u32 %v466, 7
      %v468 = vsub.s32 0, %v467
      %v469 = vrot.slane %v464, %v468
      %v470 = vlaneseq
      %v471 = vshrl.u32 %v470, 7
      %v472 = vsub.s32 1, %v471
      %v473 = vrot.slane %v464, %v472
      %v476 = vmul.f32 %v460, %v469
      %v477 = vmul.f32 %v461, %v473
      %v478 = vmul.f32 %v462, %v469
      %v479 = vmul.f32 %v463, %v473
      %480 = vst [vmem:[#allocation9] sm:$0xff] %v476
      %481 = vst [vmem:[#allocation9 + $0x8] sm:$0xff] %v477
      %482 = vst [vmem:[#allocation9 + $0x10] sm:$0xff] %v478
      %483 = vst [vmem:[#allocation9 + $0x18] sm:$0xff] %v479
    $region41: #{tpu_custom_call.1} parent=1 // pred_fallthru
      _
    // Predicated region
    $region42: #{tpu_custom_call.1} parent=1 // pred_check
      _
    $region43: #{tpu_custom_call.1} parent=1 // pred_check_branch
      %485 = sbr.rel (0) target = $region45
    $region44: #{tpu_custom_call.1} parent=1 // pred_region
      %s487 = ssub.s32 512, 512
      %488 = vsyncadd [#allocation5], %s487
      %s489 = sshll.u32 [#allocation9], 4
      %s490 = int_to_ptr.vmem [resolvable:$true] %s489
      %495 = dma.vmem_to_hbm [thread:$0]  %s490, 512, %s5, [#allocation5], 256, 256, 16
    $region45: #{tpu_custom_call.1} parent=1 // pred_fallthru
      _
    // Predicated region
    $region46: #{tpu_custom_call.1} parent=1 // pred_check
      _
    $region47: #{tpu_custom_call.1} parent=1 // pred_check_branch
      %497 = sbr.rel (0) target = $region49
    $region48: #{tpu_custom_call.1} parent=1 // pred_region
      %498 = dma.done [#allocation5], 512
    $region49: #{tpu_custom_call.1} parent=1 // pred_fallthru
      _
    %499 = vsyncpa [#allocation4], 1
    %500 = vsyncpa [#allocation7], 1
    %501 = vsyncpa [#allocation5], 1

</llo_original>
